<compile_context>
chip_gen: v5e
topology: v5e:2x2
jax: 0.10.0
libtpu: 0.0.40
codegen_flags: <defaults>
</compile_context>

<pallas_src>
import jax
import jax.numpy as jnp
from jax.experimental import pallas as pl
from jax.experimental.pallas import tpu as pltpu

block_size = 256
dropout = 0.2
n_embed = 384


def _head_kernel(x_ref, w_ref, o_ref):
    # x_ref: (1, T, C) bf16; w_ref: (C, 3*P) bf16 (P = head slot padded to 128
    # lanes, scale already folded into the Q slot); o_ref: (1, T, P) f32.
    x = x_ref[0]                              # (T, C) bf16
    T = x.shape[0]
    P = w_ref.shape[1] // 3

    # Fused QKV projection: one wide MXU matmul, f32 accumulation.
    qkv = jnp.dot(x, w_ref[...], preferred_element_type=jnp.float32)   # (T, 3P) f32

    # Slices at 128-lane boundaries (no relayout). Padded lanes are zero.
    q = qkv[:, :P].astype(jnp.bfloat16)       # scale folded into Wq
    k = qkv[:, P:2 * P].astype(jnp.bfloat16)
    v = qkv[:, 2 * P:].astype(jnp.bfloat16)

    # Scores: contract on the head axis (MXU trans_b semantics, no k.T copy).
    # Zero-padded head lanes contribute nothing.
    wei = jax.lax.dot_general(
        q, k,
        dimension_numbers=(((1,), (1,)), ((), ())),
        preferred_element_type=jnp.float32)                             # (T, T) f32

    # Causal mask generated in-kernel (pure VPU work, no HBM mask DMA).
    row = jax.lax.broadcasted_iota(jnp.int32, (T, T), 0)
    col = jax.lax.broadcasted_iota(jnp.int32, (T, T), 1)
    wei = jnp.where(row >= col, wei, -jnp.inf)

    # Softmax in f32 (VPU/EUP); approx reciprocal goes to the EUP slot.
    m = jnp.max(wei, axis=-1, keepdims=True)
    p = jnp.exp(wei - m)
    denom = jnp.sum(p, axis=-1, keepdims=True)
    attn = p * pl.reciprocal(denom, approx=True)

    # TODO(synk): training-mode dropout not implemented (eval mode == identity).

    # attn @ v with bf16 MXU operands, f32 accumulation. Output is lane-dense
    # (P = 128 wide); padded columns are zero and stripped in the wrapper.
    out = jnp.dot(attn.astype(jnp.bfloat16), v,
                  preferred_element_type=jnp.float32)                   # (T, P) f32
    o_ref[0] = out.astype(o_ref.dtype)


def head_forward(x, wq, wk, wv):
    """x: (B, T, C) f32; wq/wk/wv: (C, H) f32 (pre-transposed nn.Linear weights)."""
    B, T, C = x.shape
    H = wq.shape[1]
    P = max(128, ((H + 127) // 128) * 128)    # lane-dense padded head width
    scale = C ** (-0.5)                       # matches the PyTorch module (scales by C)

    # Fold the attention scale into the query projection weight and pad each
    # head slot to P lanes; concatenate into a single (C, 3P) fused weight.
    def _pad(w):
        return jnp.pad(w, ((0, 0), (0, P - H)))

    w_qkv = jnp.concatenate([_pad(wq * scale), _pad(wk), _pad(wv)], axis=1)  # (C, 3P)

    x16 = x.astype(jnp.bfloat16)
    w16 = w_qkv.astype(jnp.bfloat16)

    out_padded = pl.pallas_call(
        _head_kernel,
        out_shape=jax.ShapeDtypeStruct((B, T, P), jnp.float32),
        grid_spec=pltpu.PrefetchScalarGridSpec(
            num_scalar_prefetch=0,
            grid=(B,),
            in_specs=[
                pl.BlockSpec((1, T, C), lambda b: (b, 0, 0)),   # per-batch x tile
                pl.BlockSpec((C, 3 * P), lambda b: (0, 0)),     # fused, resident QKV weight
            ],
            out_specs=pl.BlockSpec((1, T, P), lambda b: (b, 0, 0)),
        ),
        compiler_params=pltpu.CompilerParams(
            dimension_semantics=("parallel",),
        ),
    )(x16, w16)

    # Strip the zero padding back to the true head size.
    return out_padded[..., :H].astype(x.dtype)


def head_reference(x, wq, wk, wv, tril):
    B, T, C = x.shape
    q = x @ wq
    k = x @ wk
    v = x @ wv
    wei = (q @ jnp.swapaxes(k, -2, -1)) * (C ** -0.5)
    wei = jnp.where(tril[:T, :T] == 0.0, -jnp.inf, wei)
    wei = jax.nn.softmax(wei, axis=-1)
    return wei @ v


if __name__ == "__main__":
    # Small, deterministic setup consistent with the module definition.
    B, T, C, H = 2, 128, n_embed, 64
    key = jax.random.PRNGKey(0)
    kx, kq, kk, kv = jax.random.split(key, 4)

    x = jax.random.normal(kx, (B, T, C), dtype=jnp.float32)
    # nn.Linear(n_embed, head_size, bias=False) weight is (H, C); we store the
    # transpose (C, H) so the kernel does x @ W directly.
    wq = jax.random.normal(kq, (C, H), dtype=jnp.float32) * 0.02
    wk = jax.random.normal(kk, (C, H), dtype=jnp.float32) * 0.02
    wv = jax.random.normal(kv, (C, H), dtype=jnp.float32) * 0.02
    tril = jnp.tril(jnp.ones((block_size, block_size), dtype=jnp.float32))

    out = head_forward(x, wq, wk, wv)
    out = jax.block_until_ready(out)

    ref = head_reference(x, wq, wk, wv, tril)
    assert out.shape == (B, T, H), out.shape
    # bf16 MXU operands (f32 accumulation) -> loosened tolerance vs f32 reference.
    assert jnp.allclose(out, ref, atol=2e-2, rtol=2e-2), \
        float(jnp.max(jnp.abs(out - ref)))

    print("KERNEL_OK")
</pallas_src>

<mosaic_0001>
module attributes {stable_mosaic.version = 11 : i64} {
  func.func @_head_kernel(%arg0: i32, %arg1: memref<1x128x384xbf16, #tpu.memory_space<vmem>>, %arg2: memref<384x384xbf16, #tpu.memory_space<vmem>>, %arg3: memref<1x128x128xf32, #tpu.memory_space<vmem>>) attributes {dimension_semantics = [#tpu.dimension_semantics<parallel>], iteration_bounds = array<i64: 2>, scalar_prefetch = 0 : i64, scratch_operands = 0 : i64, tpu.core_type = #tpu.core_type<tc>, window_params = [{transform_indices = @transform_0, window_bounds = array<i64: 1, 128, 384>}, {pipeline_mode = #tpu.pipeline_mode<synchronous>, transform_indices = @transform_1, window_bounds = array<i64: 384, 384>}, {transform_indices = @transform_2, window_bounds = array<i64: 1, 128, 128>}]} {
    %c0 = arith.constant 0 : index
    %c0_0 = arith.constant 0 : index
    %c0_1 = arith.constant 0 : index
    %0 = vector.load %arg1[%c0, %c0_0, %c0_1] : memref<1x128x384xbf16, #tpu.memory_space<vmem>>, vector<1x128x384xbf16>
    %1 = vector.shape_cast %0 : vector<1x128x384xbf16> to vector<128x384xbf16>
    %c0_2 = arith.constant 0 : index
    %c0_3 = arith.constant 0 : index
    %2 = vector.load %arg2[%c0_2, %c0_3] : memref<384x384xbf16, #tpu.memory_space<vmem>>, vector<384x384xbf16>
    %cst = arith.constant dense<0.000000e+00> : vector<128x384xf32>
    %3 = tpu.matmul %1, %2, %cst {dimension_numbers = #tpu.dot_dimension_numbers<[1], [0], [0], [1], [0, 0, 1, 1], [], []>} : vector<128x384xbf16>, vector<384x384xbf16>, vector<128x384xf32> -> vector<128x384xf32>
    %4 = vector.extract_strided_slice %3 {offsets = [0, 0], sizes = [128, 128], strides = [1, 1]} : vector<128x384xf32> to vector<128x128xf32>
    %5 = arith.truncf %4 : vector<128x128xf32> to vector<128x128xbf16>
    %6 = vector.extract_strided_slice %3 {offsets = [0, 128], sizes = [128, 128], strides = [1, 1]} : vector<128x384xf32> to vector<128x128xf32>
    %7 = arith.truncf %6 : vector<128x128xf32> to vector<128x128xbf16>
    %8 = vector.extract_strided_slice %3 {offsets = [0, 256], sizes = [128, 128], strides = [1, 1]} : vector<128x384xf32> to vector<128x128xf32>
    %9 = arith.truncf %8 : vector<128x128xf32> to vector<128x128xbf16>
    %cst_4 = arith.constant dense<0.000000e+00> : vector<128x128xf32>
    %10 = tpu.matmul %5, %7, %cst_4 {dimension_numbers = #tpu.dot_dimension_numbers<[1], [1], [0], [0], [0, 0, 1, 0], [], []>} : vector<128x128xbf16>, vector<128x128xbf16>, vector<128x128xf32> -> vector<128x128xf32>
    %11 = tpu.iota {dimensions = array<i32: 0>} : vector<128x128xi32>
    %12 = tpu.iota {dimensions = array<i32: 1>} : vector<128x128xi32>
    %13 = arith.cmpi sge, %11, %12 : vector<128x128xi32>
    %cst_5 = arith.constant 0xFF800000 : f32
    %14 = vector.broadcast %cst_5 : f32 to vector<128x128xf32>
    %15 = arith.select %13, %10, %14 : vector<128x128xi1>, vector<128x128xf32>
    %cst_6 = arith.constant dense<0xFF800000> : vector<128xf32>
    %16 = vector.multi_reduction <maximumf>, %15, %cst_6 [1] : vector<128x128xf32> to vector<128xf32>
    %17 = vector.shape_cast %16 : vector<128xf32> to vector<128x1xf32>
    %18 = vector.broadcast %17 : vector<128x1xf32> to vector<128x128xf32>
    %19 = arith.subf %15, %18 : vector<128x128xf32>
    %20 = math.exp %19 : vector<128x128xf32>
    %cst_7 = arith.constant dense<0.000000e+00> : vector<128xf32>
    %21 = vector.multi_reduction <add>, %20, %cst_7 [1] : vector<128x128xf32> to vector<128xf32>
    %22 = vector.shape_cast %21 : vector<128xf32> to vector<128x1xf32>
    %23 = tpu.reciprocal %22 {approx = true} : vector<128x1xf32> -> vector<128x1xf32>
    %24 = vector.broadcast %23 : vector<128x1xf32> to vector<128x128xf32>
    %25 = arith.mulf %20, %24 : vector<128x128xf32>
    %26 = arith.truncf %25 : vector<128x128xf32> to vector<128x128xbf16>
    %cst_8 = arith.constant dense<0.000000e+00> : vector<128x128xf32>
    %27 = tpu.matmul %26, %9, %cst_8 {dimension_numbers = #tpu.dot_dimension_numbers<[1], [0], [0], [1], [0, 0, 1, 1], [], []>} : vector<128x128xbf16>, vector<128x128xbf16>, vector<128x128xf32> -> vector<128x128xf32>
    %c0_9 = arith.constant 0 : index
    %c0_10 = arith.constant 0 : index
    %c0_11 = arith.constant 0 : index
    %28 = vector.load %arg3[%c0_9, %c0_10, %c0_11] : memref<1x128x128xf32, #tpu.memory_space<vmem>>, vector<1x128x128xf32>
    %29 = vector.shape_cast %28 : vector<1x128x128xf32> to vector<128x128xf32>
    %30 = vector.shape_cast %27 : vector<128x128xf32> to vector<1x128x128xf32>
    tpu.vector_store %arg3[%c0_9, %c0_10, %c0_11], %30 {strides = array<i32>} : memref<1x128x128xf32, #tpu.memory_space<vmem>>, vector<1x128x128xf32>,
    return
  }
  func.func @transform_0(%arg0: i32) -> (i32, i32, i32) {
    %c0_i32 = arith.constant 0 : i32
    %c0_i32_0 = arith.constant 0 : i32
    %c0_i32_1 = arith.constant 0 : i32
    return %arg0, %c0_i32, %c0_i32_0 : i32, i32, i32
  }
  func.func @transform_1(%arg0: i32) -> (i32, i32) {
    %c0_i32 = arith.constant 0 : i32
    %c0_i32_0 = arith.constant 0 : i32
    %c0_i32_1 = arith.constant 0 : i32
    return %c0_i32, %c0_i32_0 : i32, i32
  }
  func.func @transform_2(%arg0: i32) -> (i32, i32, i32) {
    %c0_i32 = arith.constant 0 : i32
    %c0_i32_0 = arith.constant 0 : i32
    %c0_i32_1 = arith.constant 0 : i32
    return %arg0, %c0_i32, %c0_i32_0 : i32, i32, i32
  }
}

</mosaic_0001>

<llo_original>
// kernel: tpu_custom_call.1
$region0: #{tpu_custom_call.1}
  #allocation0 [shape = 'u32[]', space=smem, size = 0x4, offset = 0x4, fixed_abs, tag = 'smem constant byte address 0x4 - core index']
  #allocation1 [shape = 'u32[72,128]{1,0:T(1,128)}', space=vmem, size = 0x9000, scoped, tag = 'internal scratch']
  %s0 = inlined_call_operand.hbm [shape: bf16[2,128,384], index: 0, kind: input, shape index: {}]
  %s1 = inlined_call_operand.hbm [shape: bf16[384,384], index: 1, kind: input, shape index: {}]
  %s2 = inlined_call_operand.hbm [shape: f32[2,128,128], index: 2, kind: output, shape index: {}]
  %s3 = sld [smem:[#allocation0]]
  $region49: #{tpu_custom_call.1} parent=0
    _
  %s5 = ssub.s32 1, %s3
  %s6 = scalar_select 0, %s5, %s3
  $region1: #{tpu_custom_call.1} parent=0
    #allocation2 [shape = 'u8[196608]{0}', space=vmem, size = 0x30000, scoped, tag = 'input window, operand 0']
    #allocation3 [shape = 's32[2]{0}', space=sflag, size = 0x8, scoped, tag = 'scoped memory for tpu_custom_call.1']
    #allocation4 [shape = 's32[2]{0}', space=sflag, size = 0x8, scoped, tag = 'scoped memory for tpu_custom_call.1']
    #allocation5 [shape = 'u8[294912]{0}', space=vmem, size = 0x48000, scoped, tag = 'input window, operand 1, single buffered']
    #allocation6 [shape = 's32[1]{0}', space=sflag, size = 0x4, scoped, tag = 'scoped memory for tpu_custom_call.1']
    #allocation7 [shape = 'u8[131072]{0}', space=vmem, size = 0x20000, scoped, tag = 'output window, operand 0']
    %7 = vsyncpa [#allocation3], 0
    %s8 = scalar_lea.sflag [#allocation3], 1
    %9 = vsyncpa %s8, 0
    %10 = vsyncpa [#allocation6], 0
    %11 = vsyncpa [#allocation4], 0
    %s12 = scalar_lea.sflag [#allocation4], 1
    %13 = vsyncpa %s12, 0
    loop: start=0, step=1, limit=4
    $region2: #{tpu_custom_call.1} parent=1 // loop_pre_header
      _
    $region3: #{tpu_custom_call.1} parent=1 // loop_header
      %s15 = sphi 0, %s19
      %p16 = scmp.ge.s32.totalorder %s15, 4
      %s25 = sphi 0, %s27
      %s28 = sphi 0, %s25
      %s29 = sphi 0, %s28
      %s45 = sphi 0, %s29
      %s49 = sphi 0, %s49
      %s51 = sphi 0, %s49
      %s52 = sphi 0, %s51
      %s66 = sphi 0, %s52
      %s72 = sphi 0, %s74
      %s75 = sphi 0, %s72
      %s76 = sphi 0, %s75
      %s92 = sphi 0, %s76
    $region4: #{tpu_custom_call.1} parent=1 // loop_header_branch
      %18 = sbr.rel (%p16) target = $region8
    $region5: #{tpu_custom_call.1} parent=1 // loop_body
      %s20 = ssub.s32 %s15, 1
      %s21 = ssub.s32 %s15, 2
      %s22 = sadd.s32 %s15, 1
      %s23 = ssub.s32 %s15, %s22
      %p24 = scmp.eq.s32.totalorder %s23, 0
      %s26 = sadd.s32 %s25, 1
      %s27 = scalar_select %p24, %s25, %s26
      %p30 = pneg %p24
      %p31 = scmp.eq.s32.totalorder %s15, 1
      %p32 = por %p30, %p31
      %p33 = scmp.ne.s32.totalorder %s25, %s28
      %p34 = scmp.eq.s32.totalorder %s15, 0
      %p35 = por %p33, %p34
      %p36 = scmp.ne.s32.totalorder %s25, %s28
      %p37 = scmp.eq.s32.totalorder %s20, 1
      %p38 = por %p36, %p37
      %p39 = scmp.ne.s32.totalorder %s28, %s29
      %p40 = scmp.eq.s32.totalorder %s20, 0
      %p41 = por %p39, %p40
      %p42 = scmp.ne.s32.totalorder %s28, %s29
      %p43 = scmp.eq.s32.totalorder %s21, 1
      %p44 = por %p42, %p43
      %p46 = scmp.ne.s32.totalorder %s29, %s45
      %p47 = scmp.eq.s32.totalorder %s21, 0
      %p48 = por %p46, %p47
      %s50 = sadd.s32 %s49, 1
      %p53 = scmp.eq.s32.totalorder %s15, 1
      %p54 = scmp.ne.s32.totalorder %s49, %s51
      %p55 = scmp.eq.s32.totalorder %s15, 0
      %p56 = por %p54, %p55
      %p57 = scmp.ne.s32.totalorder %s49, %s51
      %p58 = scmp.eq.s32.totalorder %s20, 1
      %p59 = por %p57, %p58
      %p60 = scmp.ne.s32.totalorder %s51, %s52
      %p61 = scmp.eq.s32.totalorder %s20, 0
      %p62 = por %p60, %p61
      %p63 = scmp.ne.s32.totalorder %s51, %s52
      %p64 = scmp.eq.s32.totalorder %s21, 1
      %p65 = por %p63, %p64
      %p67 = scmp.ne.s32.totalorder %s52, %s66
      %p68 = scmp.eq.s32.totalorder %s21, 0
      %p69 = por %p67, %p68
      %s70 = ssub.s32 %s15, %s22
      %p71 = scmp.eq.s32.totalorder %s70, 0
      %s73 = sadd.s32 %s72, 1
      %s74 = scalar_select %p71, %s72, %s73
      %p77 = pneg %p71
      %p78 = scmp.eq.s32.totalorder %s15, 1
      %p79 = por %p77, %p78
      %p80 = scmp.ne.s32.totalorder %s72, %s75
      %p81 = scmp.eq.s32.totalorder %s15, 0
      %p82 = por %p80, %p81
      %p83 = scmp.ne.s32.totalorder %s72, %s75
      %p84 = scmp.eq.s32.totalorder %s20, 1
      %p85 = por %p83, %p84
      %p86 = scmp.ne.s32.totalorder %s75, %s76
      %p87 = scmp.eq.s32.totalorder %s20, 0
      %p88 = por %p86, %p87
      %p89 = scmp.ne.s32.totalorder %s75, %s76
      %p90 = scmp.eq.s32.totalorder %s21, 1
      %p91 = por %p89, %p90
      %p93 = scmp.ne.s32.totalorder %s76, %s92
      %p94 = scmp.eq.s32.totalorder %s21, 0
      %p95 = por %p93, %p94
      %p96 = scmp.le.s32.totalorder 1, %s15
      %p97 = scmp.lt.s32.totalorder %s15, 3
      %p98 = pnand %p96, %p97
      %p99 = pneg %p98
      // Predicated region
      $region9: #{tpu_custom_call.1} parent=5 // pred_check
        _
      $region10: #{tpu_custom_call.1} parent=5 // pred_check_branch
        %101 = sbr.rel (%p98) target = $region12
      $region11: #{tpu_custom_call.1} parent=5 // pred_region
        %s102 = ssub.s32 %s15, 1
        // Predicated region
        $region13: #{tpu_custom_call.1} parent=11 // pred_check
          %p103 = pneg %p62
        $region14: #{tpu_custom_call.1} parent=11 // pred_check_branch
          %105 = sbr.rel (%p103) target = $region16
        $region15: #{tpu_custom_call.1} parent=11 // pred_region
          %107 = vsyncadd [#allocation6], 0
          %s108 = sshll.u32 %s1, 4
          %s109 = int_to_ptr.hbm [resolvable:$true] %s108
          %s110 = sshll.u32 [#allocation5], 4
          %s111 = int_to_ptr.vmem [resolvable:$true] %s110
          %116 = dma.hbm_to_vmem [thread:$0]  %s109, 9216, %s111, [#allocation6], 192, 192, 12
        $region16: #{tpu_custom_call.1} parent=11 // pred_fallthru
          _
      $region12: #{tpu_custom_call.1} parent=5 // pred_fallthru
        _
      %p117 = scmp.lt.s32.totalorder %s15, 2
      // Predicated region
      $region17: #{tpu_custom_call.1} parent=5 // pred_check
        %p118 = pneg %p117
      $region18: #{tpu_custom_call.1} parent=5 // pred_check_branch
        %120 = sbr.rel (%p118) target = $region20
      $region19: #{tpu_custom_call.1} parent=5 // pred_region
        // Predicated region
        $region21: #{tpu_custom_call.1} parent=19 // pred_check
          %p121 = pneg %p35
        $region22: #{tpu_custom_call.1} parent=19 // pred_check_branch
          %123 = sbr.rel (%p121) target = $region24
        $region23: #{tpu_custom_call.1} parent=19 // pred_region
          %s124 = sand.u32 %s25, 1
          %s125 = scalar_lea.sflag [#allocation3], %s124
          %s126 = sand.u32 %s25, 1
          %s127 = smul.addr %s126, 192
          %s128 = scalar_lea.vmem [#allocation2], %s127
          %130 = vsyncadd %s125, 0
          %s131 = smul.addr %s15, 48
          %s132 = smul.addr %s131, 4
          %s133 = scalar_lea.hbm %s0, %s132
          %s134 = sshll.u32 %s133, 4
          %s135 = int_to_ptr.hbm [resolvable:$true] %s134
          %s136 = sshll.u32 %s128, 4
          %s137 = int_to_ptr.vmem [resolvable:$true] %s136
          %142 = dma.hbm_to_vmem [thread:$0]  %s135, 3072, %s137, %s125, 192, 192, 12
        $region24: #{tpu_custom_call.1} parent=19 // pred_fallthru
          _
      $region20: #{tpu_custom_call.1} parent=5 // pred_fallthru
        _
      %p143 = scmp.le.s32.totalorder 1, %s15
      %p144 = scmp.lt.s32.totalorder %s15, 3
      %p145 = pnand %p143, %p144
      %p146 = pneg %p145
      // Predicated region
      $region25: #{tpu_custom_call.1} parent=5 // pred_check
        _
      $region26: #{tpu_custom_call.1} parent=5 // pred_check_branch
        %148 = sbr.rel (%p145) target = $region28
      $region27: #{tpu_custom_call.1} parent=5 // pred_region
        %s149 = ssub.s32 %s15, 1
        %s150 = sand.u32 %s28, 1
        %s151 = scalar_lea.sflag [#allocation3], %s150
        %s152 = sand.u32 %s28, 1
        %s153 = smul.addr %s152, 192
        %s154 = scalar_lea.vmem [#allocation2], %s153
        // Predicated region
        $region29: #{tpu_custom_call.1} parent=27 // pred_check
          %p155 = pneg %p41
        $region30: #{tpu_custom_call.1} parent=27 // pred_check_branch
          %157 = sbr.rel (%p155) target = $region32
        $region31: #{tpu_custom_call.1} parent=27 // pred_region
          %159 = dma.done %s151, 3072
        $region32: #{tpu_custom_call.1} parent=27 // pred_fallthru
          _
        // Predicated region
        $region33: #{tpu_custom_call.1} parent=27 // pred_check
          %p160 = pneg %p62
        $region34: #{tpu_custom_call.1} parent=27 // pred_check_branch
          %162 = sbr.rel (%p160) target = $region36
        $region35: #{tpu_custom_call.1} parent=27 // pred_region
          %164 = dma.done [#allocation6], 9216
        $region36: #{tpu_custom_call.1} parent=27 // pred_fallthru
          _
        %s165 = sand.u32 %s28, 1
        %s166 = scalar_lea.sflag [#allocation3], %s165
        %s167 = sand.u32 %s28, 1
        %s168 = smul.addr %s167, 192
        %s169 = scalar_lea.vmem [#allocation2], %s168
        %p170 = pneg %p41
        %p171 = pneg %p38
        %p172 = pneg %p62
        %p173 = pneg %p59
        %p174 = pneg %p88
        %p175 = pneg %p85
        %s176 = sand.u32 %s75, 1
        %s177 = scalar_lea.sflag [#allocation4], %s176
        %s178 = sand.u32 %s75, 1
        %s179 = smul.addr %s178, 128
        %s180 = scalar_lea.vmem [#allocation7], %s179
        %v181 = vld [vmem:[%s154] sm:$0xff]
        %v182 = vld [vmem:[%s154 + $0x8] sm:$0xf]
        %v183 = vld [vmem:[%s154 + $0xc] sm:$0xff]
        %v184 = vld [vmem:[%s154 + $0x14] sm:$0xf]
        %v185 = vld [vmem:[%s154 + $0x18] sm:$0xff]
        %v186 = vld [vmem:[%s154 + $0x20] sm:$0xf]
        %v187 = vld [vmem:[%s154 + $0x24] sm:$0xff]
        %v188 = vld [vmem:[%s154 + $0x2c] sm:$0xf]
        %v189 = vld [vmem:[%s154 + $0x30] sm:$0xff]
        %v190 = vld [vmem:[%s154 + $0x38] sm:$0xf]
        %v191 = vld [vmem:[%s154 + $0x3c] sm:$0xff]
        %v192 = vld [vmem:[%s154 + $0x44] sm:$0xf]
        %v193 = vld [vmem:[%s154 + $0x48] sm:$0xff]
        %v194 = vld [vmem:[%s154 + $0x50] sm:$0xf]
        %v195 = vld [vmem:[%s154 + $0x54] sm:$0xff]
        %v196 = vld [vmem:[%s154 + $0x5c] sm:$0xf]
        %v197 = vld [vmem:[%s154 + $0x60] sm:$0xff]
        %v198 = vld [vmem:[%s154 + $0x68] sm:$0xf]
        %v199 = vld [vmem:[%s154 + $0x6c] sm:$0xff]
        %v200 = vld [vmem:[%s154 + $0x74] sm:$0xf]
        %v201 = vld [vmem:[%s154 + $0x78] sm:$0xff]
        %v202 = vld [vmem:[%s154 + $0x80] sm:$0xf]
        %v203 = vld [vmem:[%s154 + $0x84] sm:$0xff]
        %v204 = vld [vmem:[%s154 + $0x8c] sm:$0xf]
        %v205 = vld [vmem:[%s154 + $0x90] sm:$0xff]
        %v206 = vld [vmem:[%s154 + $0x98] sm:$0xf]
        %v207 = vld [vmem:[%s154 + $0x9c] sm:$0xff]
        %v208 = vld [vmem:[%s154 + $0xa4] sm:$0xf]
        %v209 = vld [vmem:[%s154 + $0xa8] sm:$0xff]
        %v210 = vld [vmem:[%s154 + $0xb0] sm:$0xf]
        %v211 = vld [vmem:[%s154 + $0xb4] sm:$0xff]
        %v212 = vld [vmem:[%s154 + $0xbc] sm:$0xf]
        %v213 = vld [vmem:[#allocation5] sm:$0xff]
        %v214 = vld [vmem:[#allocation5 + $0x8] sm:$0xf]
        %v215 = vld [vmem:[#allocation5 + $0xc] sm:$0xff]
        %v216 = vld [vmem:[#allocation5 + $0x14] sm:$0xf]
        %v217 = vld [vmem:[#allocation5 + $0x18] sm:$0xff]
        %v218 = vld [vmem:[#allocation5 + $0x20] sm:$0xf]
        %v219 = vld [vmem:[#allocation5 + $0x24] sm:$0xff]
        %v220 = vld [vmem:[#allocation5 + $0x2c] sm:$0xf]
        %v221 = vld [vmem:[#allocation5 + $0x30] sm:$0xff]
        %v222 = vld [vmem:[#allocation5 + $0x38] sm:$0xf]
        %v223 = vld [vmem:[#allocation5 + $0x3c] sm:$0xff]
        %v224 = vld [vmem:[#allocation5 + $0x44] sm:$0xf]
        %v225 = vld [vmem:[#allocation5 + $0x48] sm:$0xff]
        %v226 = vld [vmem:[#allocation5 + $0x50] sm:$0xf]
        %v227 = vld [vmem:[#allocation5 + $0x54] sm:$0xff]
        %v228 = vld [vmem:[#allocation5 + $0x5c] sm:$0xf]
        %v229 = vld [vmem:[#allocation5 + $0x60] sm:$0xff]
        %v230 = vld [vmem:[#allocation5 + $0x68] sm:$0xf]
        %v231 = vld [vmem:[#allocation5 + $0x6c] sm:$0xff]
        %v232 = vld [vmem:[#allocation5 + $0x74] sm:$0xf]
        %v233 = vld [vmem:[#allocation5 + $0x78] sm:$0xff]
        %v234 = vld [vmem:[#allocation5 + $0x80] sm:$0xf]
        %v235 = vld [vmem:[#allocation5 + $0x84] sm:$0xff]
        %v236 = vld [vmem:[#allocation5 + $0x8c] sm:$0xf]
        %v237 = vld [vmem:[#allocation5 + $0x90] sm:$0xff]
        %v238 = vld [vmem:[#allocation5 + $0x98] sm:$0xf]
        %v239 = vld [vmem:[#allocation5 + $0x9c] sm:$0xff]
        %v240 = vld [vmem:[#allocation5 + $0xa4] sm:$0xf]
        %v241 = vld [vmem:[#allocation5 + $0xa8] sm:$0xff]
        %v242 = vld [vmem:[#allocation5 + $0xb0] sm:$0xf]
        %v243 = vld [vmem:[#allocation5 + $0xb4] sm:$0xff]
        %v244 = vld [vmem:[#allocation5 + $0xbc] sm:$0xf]
        %v245 = vld [vmem:[#allocation5 + $0xc0] sm:$0xff]
        %v246 = vld [vmem:[#allocation5 + $0xc8] sm:$0xf]
        %v247 = vld [vmem:[#allocation5 + $0xcc] sm:$0xff]
        %v248 = vld [vmem:[#allocation5 + $0xd4] sm:$0xf]
        %v249 = vld [vmem:[#allocation5 + $0xd8] sm:$0xff]
        %v250 = vld [vmem:[#allocation5 + $0xe0] sm:$0xf]
        %v251 = vld [vmem:[#allocation5 + $0xe4] sm:$0xff]
        %v252 = vld [vmem:[#allocation5 + $0xec] sm:$0xf]
        %v253 = vld [vmem:[#allocation5 + $0xf0] sm:$0xff]
        %v254 = vld [vmem:[#allocation5 + $0xf8] sm:$0xf]
        %v255 = vld [vmem:[#allocation5 + $0xfc] sm:$0xff]
        %v256 = vld [vmem:[#allocation5 + $0x104] sm:$0xf]
        %v257 = vld [vmem:[#allocation5 + $0x108] sm:$0xff]
        %v258 = vld [vmem:[#allocation5 + $0x110] sm:$0xf]
        %v259 = vld [vmem:[#allocation5 + $0x114] sm:$0xff]
        %v260 = vld [vmem:[#allocation5 + $0x11c] sm:$0xf]
        %v261 = vld [vmem:[#allocation5 + $0x120] sm:$0xff]
        %v262 = vld [vmem:[#allocation5 + $0x128] sm:$0xf]
        %v263 = vld [vmem:[#allocation5 + $0x12c] sm:$0xff]
        %v264 = vld [vmem:[#allocation5 + $0x134] sm:$0xf]
        %v265 = vld [vmem:[#allocation5 + $0x138] sm:$0xff]
        %v266 = vld [vmem:[#allocation5 + $0x140] sm:$0xf]
        %v267 = vld [vmem:[#allocation5 + $0x144] sm:$0xff]
        %v268 = vld [vmem:[#allocation5 + $0x14c] sm:$0xf]
        %v269 = vld [vmem:[#allocation5 + $0x150] sm:$0xff]
        %v270 = vld [vmem:[#allocation5 + $0x158] sm:$0xf]
        %v271 = vld [vmem:[#allocation5 + $0x15c] sm:$0xff]
        %v272 = vld [vmem:[#allocation5 + $0x164] sm:$0xf]
        %v273 = vld [vmem:[#allocation5 + $0x168] sm:$0xff]
        %v274 = vld [vmem:[#allocation5 + $0x170] sm:$0xf]
        %v275 = vld [vmem:[#allocation5 + $0x174] sm:$0xff]
        %v276 = vld [vmem:[#allocation5 + $0x17c] sm:$0xf]
        %v277 = vld [vmem:[#allocation5 + $0x180] sm:$0xff]
        %v278 = vld [vmem:[#allocation5 + $0x188] sm:$0xf]
        %v279 = vld [vmem:[#allocation5 + $0x18c] sm:$0xff]
        %v280 = vld [vmem:[#allocation5 + $0x194] sm:$0xf]
        %v281 = vld [vmem:[#allocation5 + $0x198] sm:$0xff]
        %v282 = vld [vmem:[#allocation5 + $0x1a0] sm:$0xf]
        %v283 = vld [vmem:[#allocation5 + $0x1a4] sm:$0xff]
        %v284 = vld [vmem:[#allocation5 + $0x1ac] sm:$0xf]
        %v285 = vld [vmem:[#allocation5 + $0x1b0] sm:$0xff]
        %v286 = vld [vmem:[#allocation5 + $0x1b8] sm:$0xf]
        %v287 = vld [vmem:[#allocation5 + $0x1bc] sm:$0xff]
        %v288 = vld [vmem:[#allocation5 + $0x1c4] sm:$0xf]
        %v289 = vld [vmem:[#allocation5 + $0x1c8] sm:$0xff]
        %v290 = vld [vmem:[#allocation5 + $0x1d0] sm:$0xf]
        %v291 = vld [vmem:[#allocation5 + $0x1d4] sm:$0xff]
        %v292 = vld [vmem:[#allocation5 + $0x1dc] sm:$0xf]
        %v293 = vld [vmem:[#allocation5 + $0x1e0] sm:$0xff]
        %v294 = vld [vmem:[#allocation5 + $0x1e8] sm:$0xf]
        %v295 = vld [vmem:[#allocation5 + $0x1ec] sm:$0xff]
        %v296 = vld [vmem:[#allocation5 + $0x1f4] sm:$0xf]
        %v297 = vld [vmem:[#allocation5 + $0x1f8] sm:$0xff]
        %v298 = vld [vmem:[#allocation5 + $0x200] sm:$0xf]
        %v299 = vld [vmem:[#allocation5 + $0x204] sm:$0xff]
        %v300 = vld [vmem:[#allocation5 + $0x20c] sm:$0xf]
        %v301 = vld [vmem:[#allocation5 + $0x210] sm:$0xff]
        %v302 = vld [vmem:[#allocation5 + $0x218] sm:$0xf]
        %v303 = vld [vmem:[#allocation5 + $0x21c] sm:$0xff]
        %v304 = vld [vmem:[#allocation5 + $0x224] sm:$0xf]
        %v305 = vld [vmem:[#allocation5 + $0x228] sm:$0xff]
        %v306 = vld [vmem:[#allocation5 + $0x230] sm:$0xf]
        %v307 = vld [vmem:[#allocation5 + $0x234] sm:$0xff]
        %v308 = vld [vmem:[#allocation5 + $0x23c] sm:$0xf]
        %v341 = vunpack.c.l.b16 %v181
        %v342 = vunpack.c.h.b16 %v181
        %v343 = vunpack.c.l.b16 %v182
        %v344 = vunpack.c.l.b16 %v183
        %v345 = vunpack.c.h.b16 %v183
        %v346 = vunpack.c.l.b16 %v184
        %v347 = vunpack.c.l.b16 %v185
        %v348 = vunpack.c.h.b16 %v185
        %v349 = vunpack.c.l.b16 %v186
        %v350 = vunpack.c.l.b16 %v187
        %v351 = vunpack.c.h.b16 %v187
        %v352 = vunpack.c.l.b16 %v188
        %v353 = vunpack.c.l.b16 %v189
        %v354 = vunpack.c.h.b16 %v189
        %v355 = vunpack.c.l.b16 %v190
        %v356 = vunpack.c.l.b16 %v191
        %v357 = vunpack.c.h.b16 %v191
        %v358 = vunpack.c.l.b16 %v192
        %v359 = vunpack.c.l.b16 %v193
        %v360 = vunpack.c.h.b16 %v193
        %v361 = vunpack.c.l.b16 %v194
        %v362 = vunpack.c.l.b16 %v195
        %v363 = vunpack.c.h.b16 %v195
        %v364 = vunpack.c.l.b16 %v196
        %v365 = vunpack.c.l.b16 %v197
        %v366 = vunpack.c.h.b16 %v197
        %v367 = vunpack.c.l.b16 %v198
        %v368 = vunpack.c.l.b16 %v199
        %v369 = vunpack.c.h.b16 %v199
        %v370 = vunpack.c.l.b16 %v200
        %v371 = vunpack.c.l.b16 %v201
        %v372 = vunpack.c.h.b16 %v201
        %v373 = vunpack.c.l.b16 %v202
        %v374 = vunpack.c.l.b16 %v203
        %v375 = vunpack.c.h.b16 %v203
        %v376 = vunpack.c.l.b16 %v204
        %v377 = vunpack.c.l.b16 %v205
        %v378 = vunpack.c.h.b16 %v205
        %v379 = vunpack.c.l.b16 %v206
        %v380 = vunpack.c.l.b16 %v207
        %v381 = vunpack.c.h.b16 %v207
        %v382 = vunpack.c.l.b16 %v208
        %v383 = vunpack.c.l.b16 %v209
        %v384 = vunpack.c.h.b16 %v209
        %v385 = vunpack.c.l.b16 %v210
        %v386 = vunpack.c.l.b16 %v211
        %v387 = vunpack.c.h.b16 %v211
        %v388 = vunpack.c.l.b16 %v212
        %v389 = vpack.c.b16 %v344, %v341
        %v390 = vpack.c.b16 %v345, %v342
        %v391 = vpack.c.b16 %v346, %v343
        %v392 = vpack.c.b16 %v350, %v347
        %v393 = vpack.c.b16 %v351, %v348
        %v394 = vpack.c.b16 %v352, %v349
        %v395 = vpack.c.b16 %v356, %v353
        %v396 = vpack.c.b16 %v357, %v354
        %v397 = vpack.c.b16 %v358, %v355
        %v398 = vpack.c.b16 %v362, %v359
        %v399 = vpack.c.b16 %v363, %v360
        %v400 = vpack.c.b16 %v364, %v361
        %v401 = vpack.c.b16 %v368, %v365
        %v402 = vpack.c.b16 %v369, %v366
        %v403 = vpack.c.b16 %v370, %v367
        %v404 = vpack.c.b16 %v374, %v371
        %v405 = vpack.c.b16 %v375, %v372
        %v406 = vpack.c.b16 %v376, %v373
        %v407 = vpack.c.b16 %v380, %v377
        %v408 = vpack.c.b16 %v381, %v378
        %v409 = vpack.c.b16 %v382, %v379
        %v410 = vpack.c.b16 %v386, %v383
        %v411 = vpack.c.b16 %v387, %v384
        %v412 = vpack.c.b16 %v388, %v385
        %v533 = vunpack.c.l.b16 %v213
        %v534 = vunpack.c.h.b16 %v213
        %v535 = vunpack.c.l.b16 %v214
        %v536 = vunpack.c.l.b16 %v215
        %v537 = vunpack.c.h.b16 %v215
        %v538 = vunpack.c.l.b16 %v216
        %v539 = vunpack.c.l.b16 %v217
        %v540 = vunpack.c.h.b16 %v217
        %v541 = vunpack.c.l.b16 %v218
        %v542 = vunpack.c.l.b16 %v219
        %v543 = vunpack.c.h.b16 %v219
        %v544 = vunpack.c.l.b16 %v220
        %v545 = vunpack.c.l.b16 %v221
        %v546 = vunpack.c.h.b16 %v221
        %v547 = vunpack.c.l.b16 %v222
        %v548 = vunpack.c.l.b16 %v223
        %v549 = vunpack.c.h.b16 %v223
        %v550 = vunpack.c.l.b16 %v224
        %v551 = vunpack.c.l.b16 %v225
        %v552 = vunpack.c.h.b16 %v225
        %v553 = vunpack.c.l.b16 %v226
        %v554 = vunpack.c.l.b16 %v227
        %v555 = vunpack.c.h.b16 %v227
        %v556 = vunpack.c.l.b16 %v228
        %v557 = vunpack.c.l.b16 %v229
        %v558 = vunpack.c.h.b16 %v229
        %v559 = vunpack.c.l.b16 %v230
        %v560 = vunpack.c.l.b16 %v231
        %v561 = vunpack.c.h.b16 %v231
        %v562 = vunpack.c.l.b16 %v232
        %v563 = vunpack.c.l.b16 %v233
        %v564 = vunpack.c.h.b16 %v233
        %v565 = vunpack.c.l.b16 %v234
        %v566 = vunpack.c.l.b16 %v235
        %v567 = vunpack.c.h.b16 %v235
        %v568 = vunpack.c.l.b16 %v236
        %v569 = vunpack.c.l.b16 %v237
        %v570 = vunpack.c.h.b16 %v237
        %v571 = vunpack.c.l.b16 %v238
        %v572 = vunpack.c.l.b16 %v239
        %v573 = vunpack.c.h.b16 %v239
        %v574 = vunpack.c.l.b16 %v240
        %v575 = vunpack.c.l.b16 %v241
        %v576 = vunpack.c.h.b16 %v241
        %v577 = vunpack.c.l.b16 %v242
        %v578 = vunpack.c.l.b16 %v243
        %v579 = vunpack.c.h.b16 %v243
        %v580 = vunpack.c.l.b16 %v244
        %v581 = vunpack.c.l.b16 %v245
        %v582 = vunpack.c.h.b16 %v245
        %v583 = vunpack.c.l.b16 %v246
        %v584 = vunpack.c.l.b16 %v247
        %v585 = vunpack.c.h.b16 %v247
        %v586 = vunpack.c.l.b16 %v248
        %v587 = vunpack.c.l.b16 %v249
        %v588 = vunpack.c.h.b16 %v249
        %v589 = vunpack.c.l.b16 %v250
        %v590 = vunpack.c.l.b16 %v251
        %v591 = vunpack.c.h.b16 %v251
        %v592 = vunpack.c.l.b16 %v252
        %v593 = vunpack.c.l.b16 %v253
        %v594 = vunpack.c.h.b16 %v253
        %v595 = vunpack.c.l.b16 %v254
        %v596 = vunpack.c.l.b16 %v255
        %v597 = vunpack.c.h.b16 %v255
        %v598 = vunpack.c.l.b16 %v256
        %v599 = vunpack.c.l.b16 %v257
        %v600 = vunpack.c.h.b16 %v257
        %v601 = vunpack.c.l.b16 %v258
        %v602 = vunpack.c.l.b16 %v259
        %v603 = vunpack.c.h.b16 %v259
        %v604 = vunpack.c.l.b16 %v260
        %v605 = vunpack.c.l.b16 %v261
        %v606 = vunpack.c.h.b16 %v261
        %v607 = vunpack.c.l.b16 %v262
        %v608 = vunpack.c.l.b16 %v263
        %v609 = vunpack.c.h.b16 %v263
        %v610 = vunpack.c.l.b16 %v264
        %v611 = vunpack.c.l.b16 %v265
        %v612 = vunpack.c.h.b16 %v265
        %v613 = vunpack.c.l.b16 %v266
        %v614 = vunpack.c.l.b16 %v267
        %v615 = vunpack.c.h.b16 %v267
        %v616 = vunpack.c.l.b16 %v268
        %v617 = vunpack.c.l.b16 %v269
        %v618 = vunpack.c.h.b16 %v269
        %v619 = vunpack.c.l.b16 %v270
        %v620 = vunpack.c.l.b16 %v271
        %v621 = vunpack.c.h.b16 %v271
        %v622 = vunpack.c.l.b16 %v272
        %v623 = vunpack.c.l.b16 %v273
        %v624 = vunpack.c.h.b16 %v273
        %v625 = vunpack.c.l.b16 %v274
        %v626 = vunpack.c.l.b16 %v275
        %v627 = vunpack.c.h.b16 %v275
        %v628 = vunpack.c.l.b16 %v276
        %v629 = vunpack.c.l.b16 %v277
        %v630 = vunpack.c.h.b16 %v277
        %v631 = vunpack.c.l.b16 %v278
        %v632 = vunpack.c.l.b16 %v279
        %v633 = vunpack.c.h.b16 %v279
        %v634 = vunpack.c.l.b16 %v280
        %v635 = vunpack.c.l.b16 %v281
        %v636 = vunpack.c.h.b16 %v281
        %v637 = vunpack.c.l.b16 %v282
        %v638 = vunpack.c.l.b16 %v283
        %v639 = vunpack.c.h.b16 %v283
        %v640 = vunpack.c.l.b16 %v284
        %v641 = vunpack.c.l.b16 %v285
        %v642 = vunpack.c.h.b16 %v285
        %v643 = vunpack.c.l.b16 %v286
        %v644 = vunpack.c.l.b16 %v287
        %v645 = vunpack.c.h.b16 %v287
        %v646 = vunpack.c.l.b16 %v288
        %v647 = vunpack.c.l.b16 %v289
        %v648 = vunpack.c.h.b16 %v289
        %v649 = vunpack.c.l.b16 %v290
        %v650 = vunpack.c.l.b16 %v291
        %v651 = vunpack.c.h.b16 %v291
        %v652 = vunpack.c.l.b16 %v292
        %v653 = vunpack.c.l.b16 %v293
        %v654 = vunpack.c.h.b16 %v293
        %v655 = vunpack.c.l.b16 %v294
        %v656 = vunpack.c.l.b16 %v295
        %v657 = vunpack.c.h.b16 %v295
        %v658 = vunpack.c.l.b16 %v296
        %v659 = vunpack.c.l.b16 %v297
        %v660 = vunpack.c.h.b16 %v297
        %v661 = vunpack.c.l.b16 %v298
        %v662 = vunpack.c.l.b16 %v299
        %v663 = vunpack.c.h.b16 %v299
        %v664 = vunpack.c.l.b16 %v300
        %v665 = vunpack.c.l.b16 %v301
        %v666 = vunpack.c.h.b16 %v301
        %v667 = vunpack.c.l.b16 %v302
        %v668 = vunpack.c.l.b16 %v303
        %v669 = vunpack.c.h.b16 %v303
        %v670 = vunpack.c.l.b16 %v304
        %v671 = vunpack.c.l.b16 %v305
        %v672 = vunpack.c.h.b16 %v305
        %v673 = vunpack.c.l.b16 %v306
        %v674 = vunpack.c.l.b16 %v307
        %v675 = vunpack.c.h.b16 %v307
        %v676 = vunpack.c.l.b16 %v308
        %v677 = vpack.c.b16 %v536, %v533
        %v678 = vpack.c.b16 %v537, %v534
        %v679 = vpack.c.b16 %v538, %v535
        %v680 = vpack.c.b16 %v542, %v539
        %v681 = vpack.c.b16 %v543, %v540
        %v682 = vpack.c.b16 %v544, %v541
        %v683 = vpack.c.b16 %v548, %v545
        %v684 = vpack.c.b16 %v549, %v546
        %v685 = vpack.c.b16 %v550, %v547
        %v686 = vpack.c.b16 %v554, %v551
        %v687 = vpack.c.b16 %v555, %v552
        %v688 = vpack.c.b16 %v556, %v553
        %v689 = vpack.c.b16 %v560, %v557
        %v690 = vpack.c.b16 %v561, %v558
        %v691 = vpack.c.b16 %v562, %v559
        %v692 = vpack.c.b16 %v566, %v563
        %v693 = vpack.c.b16 %v567, %v564
        %v694 = vpack.c.b16 %v568, %v565
        %v695 = vpack.c.b16 %v572, %v569
        %v696 = vpack.c.b16 %v573, %v570
        %v697 = vpack.c.b16 %v574, %v571
        %v698 = vpack.c.b16 %v578, %v575
        %v699 = vpack.c.b16 %v579, %v576
        %v700 = vpack.c.b16 %v580, %v577
        %v701 = vpack.c.b16 %v584, %v581
        %v702 = vpack.c.b16 %v585, %v582
        %v703 = vpack.c.b16 %v586, %v583
        %v704 = vpack.c.b16 %v590, %v587
        %v705 = vpack.c.b16 %v591, %v588
        %v706 = vpack.c.b16 %v592, %v589
        %v707 = vpack.c.b16 %v596, %v593
        %v708 = vpack.c.b16 %v597, %v594
        %v709 = vpack.c.b16 %v598, %v595
        %v710 = vpack.c.b16 %v602, %v599
        %v711 = vpack.c.b16 %v603, %v600
        %v712 = vpack.c.b16 %v604, %v601
        %v713 = vpack.c.b16 %v608, %v605
        %v714 = vpack.c.b16 %v609, %v606
        %v715 = vpack.c.b16 %v610, %v607
        %v716 = vpack.c.b16 %v614, %v611
        %v717 = vpack.c.b16 %v615, %v612
        %v718 = vpack.c.b16 %v616, %v613
        %v719 = vpack.c.b16 %v620, %v617
        %v720 = vpack.c.b16 %v621, %v618
        %v721 = vpack.c.b16 %v622, %v619
        %v722 = vpack.c.b16 %v626, %v623
        %v723 = vpack.c.b16 %v627, %v624
        %v724 = vpack.c.b16 %v628, %v625
        %v725 = vpack.c.b16 %v632, %v629
        %v726 = vpack.c.b16 %v633, %v630
        %v727 = vpack.c.b16 %v634, %v631
        %v728 = vpack.c.b16 %v638, %v635
        %v729 = vpack.c.b16 %v639, %v636
        %v730 = vpack.c.b16 %v640, %v637
        %v731 = vpack.c.b16 %v644, %v641
        %v732 = vpack.c.b16 %v645, %v642
        %v733 = vpack.c.b16 %v646, %v643
        %v734 = vpack.c.b16 %v650, %v647
        %v735 = vpack.c.b16 %v651, %v648
        %v736 = vpack.c.b16 %v652, %v649
        %v737 = vpack.c.b16 %v656, %v653
        %v738 = vpack.c.b16 %v657, %v654
        %v739 = vpack.c.b16 %v658, %v655
        %v740 = vpack.c.b16 %v662, %v659
        %v741 = vpack.c.b16 %v663, %v660
        %v742 = vpack.c.b16 %v664, %v661
        %v743 = vpack.c.b16 %v668, %v665
        %v744 = vpack.c.b16 %v669, %v666
        %v745 = vpack.c.b16 %v670, %v667
        %v746 = vpack.c.b16 %v674, %v671
        %v747 = vpack.c.b16 %v675, %v672
        %v748 = vpack.c.b16 %v676, %v673
        %821 = vmatpush.bf16.msra.mxu0 %v698
        %822 = vmatpush.bf16.msra.mxu0 %v695
        %823 = vmatpush.bf16.msra.mxu0 %v692
        %824 = vmatpush.bf16.msra.mxu0 %v689
        %825 = vmatpush.bf16.msra.mxu0 %v686
        %826 = vmatpush.bf16.msra.mxu0 %v683
        %827 = vmatpush.bf16.msra.mxu0 %v680
        %828 = vmatpush.bf16.msra.mxu0 %v677
        %829 = vmatmul.bf16.gmra.mxu0 %v389
        %v830 = vpop.f32.mrf.mxu0
        %v831 = vadd.f32 0.0, %v830
        %v832 = vpop.f32.mrf.mxu0
        %v833 = vadd.f32 0.0, %v832
        %834 = vmatmul.bf16.gmra.mxu0 %v392
        %v835 = vpop.f32.mrf.mxu0
        %v836 = vadd.f32 0.0, %v835
        %v837 = vpop.f32.mrf.mxu0
        %v838 = vadd.f32 0.0, %v837
        %839 = vmatmul.bf16.gmra.mxu0 %v395
        %v840 = vpop.f32.mrf.mxu0
        %v841 = vadd.f32 0.0, %v840
        %v842 = vpop.f32.mrf.mxu0
        %v843 = vadd.f32 0.0, %v842
        %844 = vmatmul.bf16.gmra.mxu0 %v398
        %v845 = vpop.f32.mrf.mxu0
        %v846 = vadd.f32 0.0, %v845
        %v847 = vpop.f32.mrf.mxu0
        %v848 = vadd.f32 0.0, %v847
        %849 = vmatmul.bf16.gmra.mxu0 %v401
        %v850 = vpop.f32.mrf.mxu0
        %v851 = vadd.f32 0.0, %v850
        %v852 = vpop.f32.mrf.mxu0
        %v853 = vadd.f32 0.0, %v852
        %854 = vmatmul.bf16.gmra.mxu0 %v404
        %v855 = vpop.f32.mrf.mxu0
        %v856 = vadd.f32 0.0, %v855
        %v857 = vpop.f32.mrf.mxu0
        %v858 = vadd.f32 0.0, %v857
        %859 = vmatmul.bf16.gmra.mxu0 %v407
        %v860 = vpop.f32.mrf.mxu0
        %v861 = vadd.f32 0.0, %v860
        %v862 = vpop.f32.mrf.mxu0
        %v863 = vadd.f32 0.0, %v862
        %864 = vmatmul.bf16.gmra.mxu0 %v410
        %v865 = vpop.f32.mrf.mxu0
        %v866 = vadd.f32 0.0, %v865
        %v867 = vpop.f32.mrf.mxu0
        %v868 = vadd.f32 0.0, %v867
        %869 = vdwg.mxu0
        %870 = vmatpush.bf16.msra.mxu0 %v722
        %871 = vmatpush.bf16.msra.mxu0 %v719
        %872 = vmatpush.bf16.msra.mxu0 %v716
        %873 = vmatpush.bf16.msra.mxu0 %v713
        %874 = vmatpush.bf16.msra.mxu0 %v710
        %875 = vmatpush.bf16.msra.mxu0 %v707
        %876 = vmatpush.bf16.msra.mxu0 %v704
        %877 = vmatpush.bf16.msra.mxu0 %v701
        %878 = vmatmul.bf16.gmra.mxu0 %v390
        %v879 = vpop.f32.mrf.mxu0
        %v880 = vadd.f32 %v831, %v879
        %v881 = vpop.f32.mrf.mxu0
        %v882 = vadd.f32 %v833, %v881
        %883 = vmatmul.bf16.gmra.mxu0 %v393
        %v884 = vpop.f32.mrf.mxu0
        %v885 = vadd.f32 %v836, %v884
        %v886 = vpop.f32.mrf.mxu0
        %v887 = vadd.f32 %v838, %v886
        %888 = vmatmul.bf16.gmra.mxu0 %v396
        %v889 = vpop.f32.mrf.mxu0
        %v890 = vadd.f32 %v841, %v889
        %v891 = vpop.f32.mrf.mxu0
        %v892 = vadd.f32 %v843, %v891
        %893 = vmatmul.bf16.gmra.mxu0 %v399
        %v894 = vpop.f32.mrf.mxu0
        %v895 = vadd.f32 %v846, %v894
        %v896 = vpop.f32.mrf.mxu0
        %v897 = vadd.f32 %v848, %v896
        %898 = vmatmul.bf16.gmra.mxu0 %v402
        %v899 = vpop.f32.mrf.mxu0
        %v900 = vadd.f32 %v851, %v899
        %v901 = vpop.f32.mrf.mxu0
        %v902 = vadd.f32 %v853, %v901
        %903 = vmatmul.bf16.gmra.mxu0 %v405
        %v904 = vpop.f32.mrf.mxu0
        %v905 = vadd.f32 %v856, %v904
        %v906 = vpop.f32.mrf.mxu0
        %v907 = vadd.f32 %v858, %v906
        %908 = vmatmul.bf16.gmra.mxu0 %v408
        %v909 = vpop.f32.mrf.mxu0
        %v910 = vadd.f32 %v861, %v909
        %v911 = vpop.f32.mrf.mxu0
        %v912 = vadd.f32 %v863, %v911
        %913 = vmatmul.bf16.gmra.mxu0 %v411
        %v914 = vpop.f32.mrf.mxu0
        %v915 = vadd.f32 %v866, %v914
        %v916 = vpop.f32.mrf.mxu0
        %v917 = vadd.f32 %v868, %v916
        %918 = vdwg.mxu0
        %919 = vmatpush.bf16.msra.mxu0 %v746
        %920 = vmatpush.bf16.msra.mxu0 %v743
        %921 = vmatpush.bf16.msra.mxu0 %v740
        %922 = vmatpush.bf16.msra.mxu0 %v737
        %923 = vmatpush.bf16.msra.mxu0 %v734
        %924 = vmatpush.bf16.msra.mxu0 %v731
        %925 = vmatpush.bf16.msra.mxu0 %v728
        %926 = vmatpush.bf16.msra.mxu0 %v725
        %927 = vmatmul.bf16.gmra.mxu0 %v391
        %v928 = vpop.f32.mrf.mxu0
        %v929 = vadd.f32 %v880, %v928
        %v930 = vpop.f32.mrf.mxu0
        %v931 = vadd.f32 %v882, %v930
        %932 = vmatmul.bf16.gmra.mxu0 %v394
        %v933 = vpop.f32.mrf.mxu0
        %v934 = vadd.f32 %v885, %v933
        %v935 = vpop.f32.mrf.mxu0
        %v936 = vadd.f32 %v887, %v935
        %937 = vmatmul.bf16.gmra.mxu0 %v397
        %v938 = vpop.f32.mrf.mxu0
        %v939 = vadd.f32 %v890, %v938
        %v940 = vpop.f32.mrf.mxu0
        %v941 = vadd.f32 %v892, %v940
        %942 = vmatmul.bf16.gmra.mxu0 %v400
        %v943 = vpop.f32.mrf.mxu0
        %v944 = vadd.f32 %v895, %v943
        %v945 = vpop.f32.mrf.mxu0
        %v946 = vadd.f32 %v897, %v945
        %947 = vmatmul.bf16.gmra.mxu0 %v403
        %v948 = vpop.f32.mrf.mxu0
        %v949 = vadd.f32 %v900, %v948
        %v950 = vpop.f32.mrf.mxu0
        %v951 = vadd.f32 %v902, %v950
        %952 = vmatmul.bf16.gmra.mxu0 %v406
        %v953 = vpop.f32.mrf.mxu0
        %v954 = vadd.f32 %v905, %v953
        %v955 = vpop.f32.mrf.mxu0
        %v956 = vadd.f32 %v907, %v955
        %957 = vmatmul.bf16.gmra.mxu0 %v409
        %v958 = vpop.f32.mrf.mxu0
        %v959 = vadd.f32 %v910, %v958
        %v960 = vpop.f32.mrf.mxu0
        %v961 = vadd.f32 %v912, %v960
        %962 = vmatmul.bf16.gmra.mxu0 %v412
        %v963 = vpop.f32.mrf.mxu0
        %v964 = vadd.f32 %v915, %v963
        %v965 = vpop.f32.mrf.mxu0
        %v966 = vadd.f32 %v917, %v965
        %967 = vdwg.mxu0
        %968 = vmatpush.bf16.msra.mxu0 %v699
        %969 = vmatpush.bf16.msra.mxu0 %v696
        %970 = vmatpush.bf16.msra.mxu0 %v693
        %971 = vmatpush.bf16.msra.mxu0 %v690
        %972 = vmatpush.bf16.msra.mxu0 %v687
        %973 = vmatpush.bf16.msra.mxu0 %v684
        %974 = vmatpush.bf16.msra.mxu0 %v681
        %975 = vmatpush.bf16.msra.mxu0 %v678
        %976 = vmatmul.bf16.gmra.mxu0 %v389
        %v977 = vpop.f32.mrf.mxu0
        %v978 = vadd.f32 0.0, %v977
        %v979 = vpop.f32.mrf.mxu0
        %v980 = vadd.f32 0.0, %v979
        %981 = vmatmul.bf16.gmra.mxu0 %v392
        %v982 = vpop.f32.mrf.mxu0
        %v983 = vadd.f32 0.0, %v982
        %v984 = vpop.f32.mrf.mxu0
        %v985 = vadd.f32 0.0, %v984
        %986 = vmatmul.bf16.gmra.mxu0 %v395
        %v987 = vpop.f32.mrf.mxu0
        %v988 = vadd.f32 0.0, %v987
        %v989 = vpop.f32.mrf.mxu0
        %v990 = vadd.f32 0.0, %v989
        %991 = vmatmul.bf16.gmra.mxu0 %v398
        %v992 = vpop.f32.mrf.mxu0
        %v993 = vadd.f32 0.0, %v992
        %v994 = vpop.f32.mrf.mxu0
        %v995 = vadd.f32 0.0, %v994
        %996 = vmatmul.bf16.gmra.mxu0 %v401
        %v997 = vpop.f32.mrf.mxu0
        %v998 = vadd.f32 0.0, %v997
        %v999 = vpop.f32.mrf.mxu0
        %v1000 = vadd.f32 0.0, %v999
        %1001 = vmatmul.bf16.gmra.mxu0 %v404
        %v1002 = vpop.f32.mrf.mxu0
        %v1003 = vadd.f32 0.0, %v1002
        %v1004 = vpop.f32.mrf.mxu0
        %v1005 = vadd.f32 0.0, %v1004
        %1006 = vmatmul.bf16.gmra.mxu0 %v407
        %v1007 = vpop.f32.mrf.mxu0
        %v1008 = vadd.f32 0.0, %v1007
        %v1009 = vpop.f32.mrf.mxu0
        %v1010 = vadd.f32 0.0, %v1009
        %1011 = vmatmul.bf16.gmra.mxu0 %v410
        %v1012 = vpop.f32.mrf.mxu0
        %v1013 = vadd.f32 0.0, %v1012
        %v1014 = vpop.f32.mrf.mxu0
        %v1015 = vadd.f32 0.0, %v1014
        %1016 = vdwg.mxu0
        %1017 = vmatpush.bf16.msra.mxu0 %v723
        %1018 = vmatpush.bf16.msra.mxu0 %v720
        %1019 = vmatpush.bf16.msra.mxu0 %v717
        %1020 = vmatpush.bf16.msra.mxu0 %v714
        %1021 = vmatpush.bf16.msra.mxu0 %v711
        %1022 = vmatpush.bf16.msra.mxu0 %v708
        %1023 = vmatpush.bf16.msra.mxu0 %v705
        %1024 = vmatpush.bf16.msra.mxu0 %v702
        %1025 = vmatmul.bf16.gmra.mxu0 %v390
        %v1026 = vpop.f32.mrf.mxu0
        %v1027 = vadd.f32 %v978, %v1026
        %v1028 = vpop.f32.mrf.mxu0
        %v1029 = vadd.f32 %v980, %v1028
        %1030 = vmatmul.bf16.gmra.mxu0 %v393
        %v1031 = vpop.f32.mrf.mxu0
        %v1032 = vadd.f32 %v983, %v1031
        %v1033 = vpop.f32.mrf.mxu0
        %v1034 = vadd.f32 %v985, %v1033
        %1035 = vmatmul.bf16.gmra.mxu0 %v396
        %v1036 = vpop.f32.mrf.mxu0
        %v1037 = vadd.f32 %v988, %v1036
        %v1038 = vpop.f32.mrf.mxu0
        %v1039 = vadd.f32 %v990, %v1038
        %1040 = vmatmul.bf16.gmra.mxu0 %v399
        %v1041 = vpop.f32.mrf.mxu0
        %v1042 = vadd.f32 %v993, %v1041
        %v1043 = vpop.f32.mrf.mxu0
        %v1044 = vadd.f32 %v995, %v1043
        %1045 = vmatmul.bf16.gmra.mxu0 %v402
        %v1046 = vpop.f32.mrf.mxu0
        %v1047 = vadd.f32 %v998, %v1046
        %v1048 = vpop.f32.mrf.mxu0
        %v1049 = vadd.f32 %v1000, %v1048
        %1050 = vmatmul.bf16.gmra.mxu0 %v405
        %v1051 = vpop.f32.mrf.mxu0
        %v1052 = vadd.f32 %v1003, %v1051
        %v1053 = vpop.f32.mrf.mxu0
        %v1054 = vadd.f32 %v1005, %v1053
        %1055 = vmatmul.bf16.gmra.mxu0 %v408
        %v1056 = vpop.f32.mrf.mxu0
        %v1057 = vadd.f32 %v1008, %v1056
        %v1058 = vpop.f32.mrf.mxu0
        %v1059 = vadd.f32 %v1010, %v1058
        %1060 = vmatmul.bf16.gmra.mxu0 %v411
        %v1061 = vpop.f32.mrf.mxu0
        %v1062 = vadd.f32 %v1013, %v1061
        %v1063 = vpop.f32.mrf.mxu0
        %v1064 = vadd.f32 %v1015, %v1063
        %1065 = vdwg.mxu0
        %1066 = vmatpush.bf16.msra.mxu0 %v747
        %1067 = vmatpush.bf16.msra.mxu0 %v744
        %1068 = vmatpush.bf16.msra.mxu0 %v741
        %1069 = vmatpush.bf16.msra.mxu0 %v738
        %1070 = vmatpush.bf16.msra.mxu0 %v735
        %1071 = vmatpush.bf16.msra.mxu0 %v732
        %1072 = vmatpush.bf16.msra.mxu0 %v729
        %1073 = vmatpush.bf16.msra.mxu0 %v726
        %1074 = vmatmul.bf16.gmra.mxu0 %v391
        %v1075 = vpop.f32.mrf.mxu0
        %v1076 = vadd.f32 %v1027, %v1075
        %v1077 = vpop.f32.mrf.mxu0
        %v1078 = vadd.f32 %v1029, %v1077
        %1079 = vmatmul.bf16.gmra.mxu0 %v394
        %v1080 = vpop.f32.mrf.mxu0
        %v1081 = vadd.f32 %v1032, %v1080
        %v1082 = vpop.f32.mrf.mxu0
        %v1083 = vadd.f32 %v1034, %v1082
        %1084 = vmatmul.bf16.gmra.mxu0 %v397
        %v1085 = vpop.f32.mrf.mxu0
        %v1086 = vadd.f32 %v1037, %v1085
        %v1087 = vpop.f32.mrf.mxu0
        %v1088 = vadd.f32 %v1039, %v1087
        %1089 = vmatmul.bf16.gmra.mxu0 %v400
        %v1090 = vpop.f32.mrf.mxu0
        %v1091 = vadd.f32 %v1042, %v1090
        %v1092 = vpop.f32.mrf.mxu0
        %v1093 = vadd.f32 %v1044, %v1092
        %1094 = vmatmul.bf16.gmra.mxu0 %v403
        %v1095 = vpop.f32.mrf.mxu0
        %v1096 = vadd.f32 %v1047, %v1095
        %v1097 = vpop.f32.mrf.mxu0
        %v1098 = vadd.f32 %v1049, %v1097
        %1099 = vmatmul.bf16.gmra.mxu0 %v406
        %v1100 = vpop.f32.mrf.mxu0
        %v1101 = vadd.f32 %v1052, %v1100
        %v1102 = vpop.f32.mrf.mxu0
        %v1103 = vadd.f32 %v1054, %v1102
        %1104 = vmatmul.bf16.gmra.mxu0 %v409
        %v1105 = vpop.f32.mrf.mxu0
        %v1106 = vadd.f32 %v1057, %v1105
        %v1107 = vpop.f32.mrf.mxu0
        %v1108 = vadd.f32 %v1059, %v1107
        %1109 = vmatmul.bf16.gmra.mxu0 %v412
        %v1110 = vpop.f32.mrf.mxu0
        %v1111 = vadd.f32 %v1062, %v1110
        %v1112 = vpop.f32.mrf.mxu0
        %v1113 = vadd.f32 %v1064, %v1112
        %1114 = vdwg.mxu0
        %1115 = vmatpush.bf16.msra.mxu0 %v700
        %1116 = vmatpush.bf16.msra.mxu0 %v697
        %1117 = vmatpush.bf16.msra.mxu0 %v694
        %1118 = vmatpush.bf16.msra.mxu0 %v691
        %1119 = vmatpush.bf16.msra.mxu0 %v688
        %1120 = vmatpush.bf16.msra.mxu0 %v685
        %1121 = vmatpush.bf16.msra.mxu0 %v682
        %1122 = vmatpush.bf16.msra.mxu0 %v679
        %1123 = vmatmul.bf16.gmra.mxu0 %v389
        %v1124 = vpop.f32.mrf.mxu0
        %v1125 = vadd.f32 0.0, %v1124
        %v1126 = vpop.f32.mrf.mxu0
        %v1127 = vadd.f32 0.0, %v1126
        %1128 = vmatmul.bf16.gmra.mxu0 %v392
        %v1129 = vpop.f32.mrf.mxu0
        %v1130 = vadd.f32 0.0, %v1129
        %v1131 = vpop.f32.mrf.mxu0
        %v1132 = vadd.f32 0.0, %v1131
        %1133 = vmatmul.bf16.gmra.mxu0 %v395
        %v1134 = vpop.f32.mrf.mxu0
        %v1135 = vadd.f32 0.0, %v1134
        %v1136 = vpop.f32.mrf.mxu0
        %v1137 = vadd.f32 0.0, %v1136
        %1138 = vmatmul.bf16.gmra.mxu0 %v398
        %v1139 = vpop.f32.mrf.mxu0
        %v1140 = vadd.f32 0.0, %v1139
        %v1141 = vpop.f32.mrf.mxu0
        %v1142 = vadd.f32 0.0, %v1141
        %1143 = vmatmul.bf16.gmra.mxu0 %v401
        %v1144 = vpop.f32.mrf.mxu0
        %v1145 = vadd.f32 0.0, %v1144
        %v1146 = vpop.f32.mrf.mxu0
        %v1147 = vadd.f32 0.0, %v1146
        %1148 = vmatmul.bf16.gmra.mxu0 %v404
        %v1149 = vpop.f32.mrf.mxu0
        %v1150 = vadd.f32 0.0, %v1149
        %v1151 = vpop.f32.mrf.mxu0
        %v1152 = vadd.f32 0.0, %v1151
        %1153 = vmatmul.bf16.gmra.mxu0 %v407
        %v1154 = vpop.f32.mrf.mxu0
        %v1155 = vadd.f32 0.0, %v1154
        %v1156 = vpop.f32.mrf.mxu0
        %v1157 = vadd.f32 0.0, %v1156
        %1158 = vmatmul.bf16.gmra.mxu0 %v410
        %v1159 = vpop.f32.mrf.mxu0
        %v1160 = vadd.f32 0.0, %v1159
        %v1161 = vpop.f32.mrf.mxu0
        %v1162 = vadd.f32 0.0, %v1161
        %1163 = vdwg.mxu0
        %1164 = vmatpush.bf16.msra.mxu0 %v724
        %1165 = vmatpush.bf16.msra.mxu0 %v721
        %1166 = vmatpush.bf16.msra.mxu0 %v718
        %1167 = vmatpush.bf16.msra.mxu0 %v715
        %1168 = vmatpush.bf16.msra.mxu0 %v712
        %1169 = vmatpush.bf16.msra.mxu0 %v709
        %1170 = vmatpush.bf16.msra.mxu0 %v706
        %1171 = vmatpush.bf16.msra.mxu0 %v703
        %1172 = vmatmul.bf16.gmra.mxu0 %v390
        %v1173 = vpop.f32.mrf.mxu0
        %v1174 = vadd.f32 %v1125, %v1173
        %v1175 = vpop.f32.mrf.mxu0
        %v1176 = vadd.f32 %v1127, %v1175
        %1177 = vmatmul.bf16.gmra.mxu0 %v393
        %v1178 = vpop.f32.mrf.mxu0
        %v1179 = vadd.f32 %v1130, %v1178
        %v1180 = vpop.f32.mrf.mxu0
        %v1181 = vadd.f32 %v1132, %v1180
        %1182 = vmatmul.bf16.gmra.mxu0 %v396
        %v1183 = vpop.f32.mrf.mxu0
        %v1184 = vadd.f32 %v1135, %v1183
        %v1185 = vpop.f32.mrf.mxu0
        %v1186 = vadd.f32 %v1137, %v1185
        %1187 = vmatmul.bf16.gmra.mxu0 %v399
        %v1188 = vpop.f32.mrf.mxu0
        %v1189 = vadd.f32 %v1140, %v1188
        %v1190 = vpop.f32.mrf.mxu0
        %v1191 = vadd.f32 %v1142, %v1190
        %1192 = vmatmul.bf16.gmra.mxu0 %v402
        %v1193 = vpop.f32.mrf.mxu0
        %v1194 = vadd.f32 %v1145, %v1193
        %v1195 = vpop.f32.mrf.mxu0
        %v1196 = vadd.f32 %v1147, %v1195
        %1197 = vmatmul.bf16.gmra.mxu0 %v405
        %v1198 = vpop.f32.mrf.mxu0
        %v1199 = vadd.f32 %v1150, %v1198
        %v1200 = vpop.f32.mrf.mxu0
        %v1201 = vadd.f32 %v1152, %v1200
        %1202 = vmatmul.bf16.gmra.mxu0 %v408
        %v1203 = vpop.f32.mrf.mxu0
        %v1204 = vadd.f32 %v1155, %v1203
        %v1205 = vpop.f32.mrf.mxu0
        %v1206 = vadd.f32 %v1157, %v1205
        %1207 = vmatmul.bf16.gmra.mxu0 %v411
        %v1208 = vpop.f32.mrf.mxu0
        %v1209 = vadd.f32 %v1160, %v1208
        %v1210 = vpop.f32.mrf.mxu0
        %v1211 = vadd.f32 %v1162, %v1210
        %1212 = vdwg.mxu0
        %1213 = vmatpush.bf16.msra.mxu0 %v748
        %1214 = vmatpush.bf16.msra.mxu0 %v745
        %1215 = vmatpush.bf16.msra.mxu0 %v742
        %1216 = vmatpush.bf16.msra.mxu0 %v739
        %1217 = vmatpush.bf16.msra.mxu0 %v736
        %1218 = vmatpush.bf16.msra.mxu0 %v733
        %1219 = vmatpush.bf16.msra.mxu0 %v730
        %1220 = vmatpush.bf16.msra.mxu0 %v727
        %1221 = vmatmul.bf16.gmra.mxu0 %v391
        %v1222 = vpop.f32.mrf.mxu0
        %v1223 = vadd.f32 %v1174, %v1222
        %v1224 = vpop.f32.mrf.mxu0
        %v1225 = vadd.f32 %v1176, %v1224
        %1226 = vmatmul.bf16.gmra.mxu0 %v394
        %v1227 = vpop.f32.mrf.mxu0
        %v1228 = vadd.f32 %v1179, %v1227
        %v1229 = vpop.f32.mrf.mxu0
        %v1230 = vadd.f32 %v1181, %v1229
        %1231 = vmatmul.bf16.gmra.mxu0 %v397
        %v1232 = vpop.f32.mrf.mxu0
        %v1233 = vadd.f32 %v1184, %v1232
        %v1234 = vpop.f32.mrf.mxu0
        %v1235 = vadd.f32 %v1186, %v1234
        %1236 = vmatmul.bf16.gmra.mxu0 %v400
        %v1237 = vpop.f32.mrf.mxu0
        %v1238 = vadd.f32 %v1189, %v1237
        %v1239 = vpop.f32.mrf.mxu0
        %v1240 = vadd.f32 %v1191, %v1239
        %1241 = vmatmul.bf16.gmra.mxu0 %v403
        %v1242 = vpop.f32.mrf.mxu0
        %v1243 = vadd.f32 %v1194, %v1242
        %v1244 = vpop.f32.mrf.mxu0
        %v1245 = vadd.f32 %v1196, %v1244
        %1246 = vmatmul.bf16.gmra.mxu0 %v406
        %v1247 = vpop.f32.mrf.mxu0
        %v1248 = vadd.f32 %v1199, %v1247
        %v1249 = vpop.f32.mrf.mxu0
        %v1250 = vadd.f32 %v1201, %v1249
        %1251 = vmatmul.bf16.gmra.mxu0 %v409
        %v1252 = vpop.f32.mrf.mxu0
        %v1253 = vadd.f32 %v1204, %v1252
        %v1254 = vpop.f32.mrf.mxu0
        %v1255 = vadd.f32 %v1206, %v1254
        %1256 = vmatmul.bf16.gmra.mxu0 %v412
        %v1257 = vpop.f32.mrf.mxu0
        %v1258 = vadd.f32 %v1209, %v1257
        %v1259 = vpop.f32.mrf.mxu0
        %v1260 = vadd.f32 %v1211, %v1259
        %1261 = vdwg.mxu0
        %v1262 = vpack.c.bf16 %v931, %v929
        %v1263 = vpack.c.bf16 %v936, %v934
        %v1264 = vpack.c.bf16 %v941, %v939
        %v1265 = vpack.c.bf16 %v946, %v944
        %v1266 = vpack.c.bf16 %v951, %v949
        %v1267 = vpack.c.bf16 %v956, %v954
        %v1268 = vpack.c.bf16 %v961, %v959
        %v1269 = vpack.c.bf16 %v966, %v964
        %v1270 = vpack.c.bf16 %v1078, %v1076
        %v1271 = vpack.c.bf16 %v1083, %v1081
        %v1272 = vpack.c.bf16 %v1088, %v1086
        %v1273 = vpack.c.bf16 %v1093, %v1091
        %v1274 = vpack.c.bf16 %v1098, %v1096
        %v1275 = vpack.c.bf16 %v1103, %v1101
        %v1276 = vpack.c.bf16 %v1108, %v1106
        %v1277 = vpack.c.bf16 %v1113, %v1111
        %v1278 = vpack.c.bf16 %v1225, %v1223
        %v1279 = vpack.c.bf16 %v1230, %v1228
        %v1280 = vpack.c.bf16 %v1235, %v1233
        %v1281 = vpack.c.bf16 %v1240, %v1238
        %v1282 = vpack.c.bf16 %v1245, %v1243
        %v1283 = vpack.c.bf16 %v1250, %v1248
        %v1284 = vpack.c.bf16 %v1255, %v1253
        %v1285 = vpack.c.bf16 %v1260, %v1258
        %1286 = vmatpush.bf16.xpose.msra.mxu0 %v1277
        %1287 = vmatpush.bf16.xpose.msra.mxu0 %v1276
        %1288 = vmatpush.bf16.xpose.msra.mxu0 %v1275
        %1289 = vmatpush.bf16.xpose.msra.mxu0 %v1274
        %1290 = vmatpush.bf16.xpose.msra.mxu0 %v1273
        %1291 = vmatpush.bf16.xpose.msra.mxu0 %v1272
        %1292 = vmatpush.bf16.xpose.msra.mxu0 %v1271
        %1293 = vmatpush.bf16.xpose.msra.mxu0 %v1270
        %1294 = vmatmul.bf16.gmra.mxu0 %v1262
        %v1295 = vpop.f32.mrf.mxu0
        %v1296 = vadd.f32 0.0, %v1295
        %v1297 = vpop.f32.mrf.mxu0
        %v1298 = vadd.f32 0.0, %v1297
        %1299 = vmatmul.bf16.gmra.mxu0 %v1263
        %v1300 = vpop.f32.mrf.mxu0
        %v1301 = vadd.f32 0.0, %v1300
        %v1302 = vpop.f32.mrf.mxu0
        %v1303 = vadd.f32 0.0, %v1302
        %1304 = vmatmul.bf16.gmra.mxu0 %v1264
        %v1305 = vpop.f32.mrf.mxu0
        %v1306 = vadd.f32 0.0, %v1305
        %v1307 = vpop.f32.mrf.mxu0
        %v1308 = vadd.f32 0.0, %v1307
        %1309 = vmatmul.bf16.gmra.mxu0 %v1265
        %v1310 = vpop.f32.mrf.mxu0
        %v1311 = vadd.f32 0.0, %v1310
        %v1312 = vpop.f32.mrf.mxu0
        %v1313 = vadd.f32 0.0, %v1312
        %1314 = vmatmul.bf16.gmra.mxu0 %v1266
        %v1315 = vpop.f32.mrf.mxu0
        %v1316 = vadd.f32 0.0, %v1315
        %v1317 = vpop.f32.mrf.mxu0
        %v1318 = vadd.f32 0.0, %v1317
        %1319 = vmatmul.bf16.gmra.mxu0 %v1267
        %v1320 = vpop.f32.mrf.mxu0
        %v1321 = vadd.f32 0.0, %v1320
        %v1322 = vpop.f32.mrf.mxu0
        %v1323 = vadd.f32 0.0, %v1322
        %1324 = vmatmul.bf16.gmra.mxu0 %v1268
        %v1325 = vpop.f32.mrf.mxu0
        %v1326 = vadd.f32 0.0, %v1325
        %v1327 = vpop.f32.mrf.mxu0
        %v1328 = vadd.f32 0.0, %v1327
        %1329 = vmatmul.bf16.gmra.mxu0 %v1269
        %v1330 = vpop.f32.mrf.mxu0
        %v1331 = vadd.f32 0.0, %v1330
        %v1332 = vpop.f32.mrf.mxu0
        %v1333 = vadd.f32 0.0, %v1332
        %1334 = vdwg.mxu0
        %v1335 = vlaneseq
        %v1336 = vshrl.u32 %v1335, 7
        %v1337 = vadd.s32 %v1336, 8
        %v1338 = vadd.s32 %v1336, 16
        %v1339 = vadd.s32 %v1336, 24
        %v1340 = vadd.s32 %v1336, 32
        %v1341 = vadd.s32 %v1336, 40
        %v1342 = vadd.s32 %v1336, 48
        %v1343 = vadd.s32 %v1336, 56
        %v1344 = vadd.s32 %v1336, 64
        %v1345 = vadd.s32 %v1336, 72
        %v1346 = vadd.s32 %v1336, 80
        %v1347 = vadd.s32 %v1336, 88
        %v1348 = vadd.s32 %v1336, 96
        %v1349 = vadd.s32 %v1336, 104
        %v1350 = vadd.s32 %v1336, 112
        %v1351 = vadd.s32 %v1336, 120
        %v1352 = vlaneseq
        %v1353 = vand.u32 %v1352, 127
        %vm1354 = vcmp.ge.s32.totalorder %v1336, %v1353
        %vm1355 = vcmp.ge.s32.totalorder %v1337, %v1353
        %vm1356 = vcmp.ge.s32.totalorder %v1338, %v1353
        %vm1357 = vcmp.ge.s32.totalorder %v1339, %v1353
        %vm1358 = vcmp.ge.s32.totalorder %v1340, %v1353
        %vm1359 = vcmp.ge.s32.totalorder %v1341, %v1353
        %vm1360 = vcmp.ge.s32.totalorder %v1342, %v1353
        %vm1361 = vcmp.ge.s32.totalorder %v1343, %v1353
        %vm1362 = vcmp.ge.s32.totalorder %v1344, %v1353
        %vm1363 = vcmp.ge.s32.totalorder %v1345, %v1353
        %vm1364 = vcmp.ge.s32.totalorder %v1346, %v1353
        %vm1365 = vcmp.ge.s32.totalorder %v1347, %v1353
        %vm1366 = vcmp.ge.s32.totalorder %v1348, %v1353
        %vm1367 = vcmp.ge.s32.totalorder %v1349, %v1353
        %vm1368 = vcmp.ge.s32.totalorder %v1350, %v1353
        %vm1369 = vcmp.ge.s32.totalorder %v1351, %v1353
        %v1370 = vsel %vm1354, %v1296, -inf
        %v1371 = vsel %vm1355, %v1298, -inf
        %v1372 = vsel %vm1356, %v1301, -inf
        %v1373 = vsel %vm1357, %v1303, -inf
        %v1374 = vsel %vm1358, %v1306, -inf
        %v1375 = vsel %vm1359, %v1308, -inf
        %v1376 = vsel %vm1360, %v1311, -inf
        %v1377 = vsel %vm1361, %v1313, -inf
        %v1378 = vsel %vm1362, %v1316, -inf
        %v1379 = vsel %vm1363, %v1318, -inf
        %v1380 = vsel %vm1364, %v1321, -inf
        %v1381 = vsel %vm1365, %v1323, -inf
        %v1382 = vsel %vm1366, %v1326, -inf
        %v1383 = vsel %vm1367, %v1328, -inf
        %v1384 = vsel %vm1368, %v1331, -inf
        %v1385 = vsel %vm1369, %v1333, -inf
        %1386 = vmax.xlane.f32.xlu0 %v1370
        %v1387 = vpop.xlane.xlu0 %1386
        %1388 = vmax.xlane.f32.xlu0 %v1371
        %v1389 = vpop.xlane.xlu0 %1388
        %1390 = vmax.xlane.f32.xlu0 %v1372
        %v1391 = vpop.xlane.xlu0 %1390
        %1392 = vmax.xlane.f32.xlu0 %v1373
        %v1393 = vpop.xlane.xlu0 %1392
        %1394 = vmax.xlane.f32.xlu0 %v1374
        %v1395 = vpop.xlane.xlu0 %1394
        %1396 = vmax.xlane.f32.xlu0 %v1375
        %v1397 = vpop.xlane.xlu0 %1396
        %1398 = vmax.xlane.f32.xlu0 %v1376
        %v1399 = vpop.xlane.xlu0 %1398
        %1400 = vmax.xlane.f32.xlu0 %v1377
        %v1401 = vpop.xlane.xlu0 %1400
        %1402 = vmax.xlane.f32.xlu0 %v1378
        %v1403 = vpop.xlane.xlu0 %1402
        %1404 = vmax.xlane.f32.xlu0 %v1379
        %v1405 = vpop.xlane.xlu0 %1404
        %1406 = vmax.xlane.f32.xlu0 %v1380
        %v1407 = vpop.xlane.xlu0 %1406
        %1408 = vmax.xlane.f32.xlu0 %v1381
        %v1409 = vpop.xlane.xlu0 %1408
        %1410 = vmax.xlane.f32.xlu0 %v1382
        %v1411 = vpop.xlane.xlu0 %1410
        %1412 = vmax.xlane.f32.xlu0 %v1383
        %v1413 = vpop.xlane.xlu0 %1412
        %1414 = vmax.xlane.f32.xlu0 %v1384
        %v1415 = vpop.xlane.xlu0 %1414
        %1416 = vmax.xlane.f32.xlu0 %v1385
        %v1417 = vpop.xlane.xlu0 %1416
        %v1418 = vsub.f32 %v1370, %v1387
        %v1419 = vsub.f32 %v1371, %v1389
        %v1420 = vsub.f32 %v1372, %v1391
        %v1421 = vsub.f32 %v1373, %v1393
        %v1422 = vsub.f32 %v1374, %v1395
        %v1423 = vsub.f32 %v1375, %v1397
        %v1424 = vsub.f32 %v1376, %v1399
        %v1425 = vsub.f32 %v1377, %v1401
        %v1426 = vsub.f32 %v1378, %v1403
        %v1427 = vsub.f32 %v1379, %v1405
        %v1428 = vsub.f32 %v1380, %v1407
        %v1429 = vsub.f32 %v1381, %v1409
        %v1430 = vsub.f32 %v1382, %v1411
        %v1431 = vsub.f32 %v1383, %v1413
        %v1432 = vsub.f32 %v1384, %v1415
        %v1433 = vsub.f32 %v1385, %v1417
        %v1434 = vmul.f32 %v1418, 1.442695
        %v1435 = vpow.pop %v1434
        %v1436 = vmul.f32 %v1419, 1.442695
        %v1437 = vpow.pop %v1436
        %v1438 = vmul.f32 %v1420, 1.442695
        %v1439 = vpow.pop %v1438
        %v1440 = vmul.f32 %v1421, 1.442695
        %v1441 = vpow.pop %v1440
        %v1442 = vmul.f32 %v1422, 1.442695
        %v1443 = vpow.pop %v1442
        %v1444 = vmul.f32 %v1423, 1.442695
        %v1445 = vpow.pop %v1444
        %v1446 = vmul.f32 %v1424, 1.442695
        %v1447 = vpow.pop %v1446
        %v1448 = vmul.f32 %v1425, 1.442695
        %v1449 = vpow.pop %v1448
        %v1450 = vmul.f32 %v1426, 1.442695
        %v1451 = vpow.pop %v1450
        %v1452 = vmul.f32 %v1427, 1.442695
        %v1453 = vpow.pop %v1452
        %v1454 = vmul.f32 %v1428, 1.442695
        %v1455 = vpow.pop %v1454
        %v1456 = vmul.f32 %v1429, 1.442695
        %v1457 = vpow.pop %v1456
        %v1458 = vmul.f32 %v1430, 1.442695
        %v1459 = vpow.pop %v1458
        %v1460 = vmul.f32 %v1431, 1.442695
        %v1461 = vpow.pop %v1460
        %v1462 = vmul.f32 %v1432, 1.442695
        %v1463 = vpow.pop %v1462
        %v1464 = vmul.f32 %v1433, 1.442695
        %v1465 = vpow.pop %v1464
        %1466 = vadd.xlane.f32.xlu0 %v1435
        %v1467 = vpop.xlane.xlu0 %1466
        %1468 = vadd.xlane.f32.xlu0 %v1437
        %v1469 = vpop.xlane.xlu0 %1468
        %1470 = vadd.xlane.f32.xlu0 %v1439
        %v1471 = vpop.xlane.xlu0 %1470
        %1472 = vadd.xlane.f32.xlu0 %v1441
        %v1473 = vpop.xlane.xlu0 %1472
        %1474 = vadd.xlane.f32.xlu0 %v1443
        %v1475 = vpop.xlane.xlu0 %1474
        %1476 = vadd.xlane.f32.xlu0 %v1445
        %v1477 = vpop.xlane.xlu0 %1476
        %1478 = vadd.xlane.f32.xlu0 %v1447
        %v1479 = vpop.xlane.xlu0 %1478
        %1480 = vadd.xlane.f32.xlu0 %v1449
        %v1481 = vpop.xlane.xlu0 %1480
        %1482 = vadd.xlane.f32.xlu0 %v1451
        %v1483 = vpop.xlane.xlu0 %1482
        %1484 = vadd.xlane.f32.xlu0 %v1453
        %v1485 = vpop.xlane.xlu0 %1484
        %1486 = vadd.xlane.f32.xlu0 %v1455
        %v1487 = vpop.xlane.xlu0 %1486
        %1488 = vadd.xlane.f32.xlu0 %v1457
        %v1489 = vpop.xlane.xlu0 %1488
        %1490 = vadd.xlane.f32.xlu0 %v1459
        %v1491 = vpop.xlane.xlu0 %1490
        %1492 = vadd.xlane.f32.xlu0 %v1461
        %v1493 = vpop.xlane.xlu0 %1492
        %1494 = vadd.xlane.f32.xlu0 %v1463
        %v1495 = vpop.xlane.xlu0 %1494
        %1496 = vadd.xlane.f32.xlu0 %v1465
        %v1497 = vpop.xlane.xlu0 %1496
        %v1498 = vrcp.pop %v1467
        %v1499 = vrcp.pop %v1469
        %v1500 = vrcp.pop %v1471
        %v1501 = vrcp.pop %v1473
        %v1502 = vrcp.pop %v1475
        %v1503 = vrcp.pop %v1477
        %v1504 = vrcp.pop %v1479
        %v1505 = vrcp.pop %v1481
        %v1506 = vrcp.pop %v1483
        %v1507 = vrcp.pop %v1485
        %v1508 = vrcp.pop %v1487
        %v1509 = vrcp.pop %v1489
        %v1510 = vrcp.pop %v1491
        %v1511 = vrcp.pop %v1493
        %v1512 = vrcp.pop %v1495
        %v1513 = vrcp.pop %v1497
        %v1514 = vmul.f32 %v1435, %v1498
        %v1515 = vmul.f32 %v1437, %v1499
        %v1516 = vmul.f32 %v1439, %v1500
        %v1517 = vmul.f32 %v1441, %v1501
        %v1518 = vmul.f32 %v1443, %v1502
        %v1519 = vmul.f32 %v1445, %v1503
        %v1520 = vmul.f32 %v1447, %v1504
        %v1521 = vmul.f32 %v1449, %v1505
        %v1522 = vmul.f32 %v1451, %v1506
        %v1523 = vmul.f32 %v1453, %v1507
        %v1524 = vmul.f32 %v1455, %v1508
        %v1525 = vmul.f32 %v1457, %v1509
        %v1526 = vmul.f32 %v1459, %v1510
        %v1527 = vmul.f32 %v1461, %v1511
        %v1528 = vmul.f32 %v1463, %v1512
        %v1529 = vmul.f32 %v1465, %v1513
        %v1530 = vpack.c.bf16 %v1515, %v1514
        %v1531 = vpack.c.bf16 %v1517, %v1516
        %v1532 = vpack.c.bf16 %v1519, %v1518
        %v1533 = vpack.c.bf16 %v1521, %v1520
        %v1534 = vpack.c.bf16 %v1523, %v1522
        %v1535 = vpack.c.bf16 %v1525, %v1524
        %v1536 = vpack.c.bf16 %v1527, %v1526
        %v1537 = vpack.c.bf16 %v1529, %v1528
        %1538 = vmatpush.bf16.msra.mxu0 %v1285
        %1539 = vmatpush.bf16.msra.mxu0 %v1284
        %1540 = vmatpush.bf16.msra.mxu0 %v1283
        %1541 = vmatpush.bf16.msra.mxu0 %v1282
        %1542 = vmatpush.bf16.msra.mxu0 %v1281
        %1543 = vmatpush.bf16.msra.mxu0 %v1280
        %1544 = vmatpush.bf16.msra.mxu0 %v1279
        %1545 = vmatpush.bf16.msra.mxu0 %v1278
        %1546 = vmatmul.bf16.gmra.mxu0 %v1530
        %v1547 = vpop.f32.mrf.mxu0
        %v1548 = vadd.f32 0.0, %v1547
        %v1549 = vpop.f32.mrf.mxu0
        %v1550 = vadd.f32 0.0, %v1549
        %1551 = vmatmul.bf16.gmra.mxu0 %v1531
        %v1552 = vpop.f32.mrf.mxu0
        %v1553 = vadd.f32 0.0, %v1552
        %v1554 = vpop.f32.mrf.mxu0
        %v1555 = vadd.f32 0.0, %v1554
        %1556 = vmatmul.bf16.gmra.mxu0 %v1532
        %v1557 = vpop.f32.mrf.mxu0
        %v1558 = vadd.f32 0.0, %v1557
        %v1559 = vpop.f32.mrf.mxu0
        %v1560 = vadd.f32 0.0, %v1559
        %1561 = vmatmul.bf16.gmra.mxu0 %v1533
        %v1562 = vpop.f32.mrf.mxu0
        %v1563 = vadd.f32 0.0, %v1562
        %v1564 = vpop.f32.mrf.mxu0
        %v1565 = vadd.f32 0.0, %v1564
        %1566 = vmatmul.bf16.gmra.mxu0 %v1534
        %v1567 = vpop.f32.mrf.mxu0
        %v1568 = vadd.f32 0.0, %v1567
        %v1569 = vpop.f32.mrf.mxu0
        %v1570 = vadd.f32 0.0, %v1569
        %1571 = vmatmul.bf16.gmra.mxu0 %v1535
        %v1572 = vpop.f32.mrf.mxu0
        %v1573 = vadd.f32 0.0, %v1572
        %v1574 = vpop.f32.mrf.mxu0
        %v1575 = vadd.f32 0.0, %v1574
        %1576 = vmatmul.bf16.gmra.mxu0 %v1536
        %v1577 = vpop.f32.mrf.mxu0
        %v1578 = vadd.f32 0.0, %v1577
        %v1579 = vpop.f32.mrf.mxu0
        %v1580 = vadd.f32 0.0, %v1579
        %1581 = vmatmul.bf16.gmra.mxu0 %v1537
        %v1582 = vpop.f32.mrf.mxu0
        %v1583 = vadd.f32 0.0, %v1582
        %v1584 = vpop.f32.mrf.mxu0
        %v1585 = vadd.f32 0.0, %v1584
        %1586 = vdwg.mxu0
        %1587 = vst [vmem:[%s180] sm:$0xff] %v1548
        %1588 = vst [vmem:[%s180 + $0x8] sm:$0xff] %v1550
        %1589 = vst [vmem:[%s180 + $0x10] sm:$0xff] %v1553
        %1590 = vst [vmem:[%s180 + $0x18] sm:$0xff] %v1555
        %1591 = vst [vmem:[%s180 + $0x20] sm:$0xff] %v1558
        %1592 = vst [vmem:[%s180 + $0x28] sm:$0xff] %v1560
        %1593 = vst [vmem:[%s180 + $0x30] sm:$0xff] %v1563
        %1594 = vst [vmem:[%s180 + $0x38] sm:$0xff] %v1565
        %1595 = vst [vmem:[%s180 + $0x40] sm:$0xff] %v1568
        %1596 = vst [vmem:[%s180 + $0x48] sm:$0xff] %v1570
        %1597 = vst [vmem:[%s180 + $0x50] sm:$0xff] %v1573
        %1598 = vst [vmem:[%s180 + $0x58] sm:$0xff] %v1575
        %1599 = vst [vmem:[%s180 + $0x60] sm:$0xff] %v1578
        %1600 = vst [vmem:[%s180 + $0x68] sm:$0xff] %v1580
        %1601 = vst [vmem:[%s180 + $0x70] sm:$0xff] %v1583
        %1602 = vst [vmem:[%s180 + $0x78] sm:$0xff] %v1585
        %s1603 = sand.u32 %s75, 1
        %s1604 = scalar_lea.sflag [#allocation4], %s1603
        %s1605 = sand.u32 %s75, 1
        %s1606 = smul.addr %s1605, 128
        %s1607 = scalar_lea.vmem [#allocation7], %s1606
        // Predicated region
        $region37: #{tpu_custom_call.1} parent=27 // pred_check
          %p1608 = pneg %p85
        $region38: #{tpu_custom_call.1} parent=27 // pred_check_branch
          %1610 = sbr.rel (%p1608) target = $region40
        $region39: #{tpu_custom_call.1} parent=27 // pred_region
          %1612 = vsyncadd %s1604, 0
          %s1613 = smul.addr %s20, 16
          %s1614 = smul.addr %s1613, 8
          %s1615 = scalar_lea.hbm %s2, %s1614
          %s1616 = sshll.u32 %s1607, 4
          %s1617 = int_to_ptr.vmem [resolvable:$true] %s1616
          %s1618 = sshll.u32 %s1615, 4
          %s1619 = int_to_ptr.hbm [resolvable:$true] %s1618
          %1624 = dma.vmem_to_hbm [thread:$0]  %s1617, 2048, %s1619, %s1604, 128, 128, 8
        $region40: #{tpu_custom_call.1} parent=27 // pred_fallthru
          _
      $region28: #{tpu_custom_call.1} parent=5 // pred_fallthru
        _
      %p1625 = scmp.le.s32.totalorder 2, %s15
      // Predicated region
      $region41: #{tpu_custom_call.1} parent=5 // pred_check
        %p1626 = pneg %p1625
      $region42: #{tpu_custom_call.1} parent=5 // pred_check_branch
        %1628 = sbr.rel (%p1626) target = $region44
      $region43: #{tpu_custom_call.1} parent=5 // pred_region
        %s1629 = ssub.s32 %s15, 2
        // Predicated region
        $region45: #{tpu_custom_call.1} parent=43 // pred_check
          %p1630 = pneg %p91
        $region46: #{tpu_custom_call.1} parent=43 // pred_check_branch
          %1632 = sbr.rel (%p1630) target = $region48
        $region47: #{tpu_custom_call.1} parent=43 // pred_region
          %s1633 = sand.u32 %s76, 1
          %s1634 = scalar_lea.sflag [#allocation4], %s1633
          %s1635 = sand.u32 %s76, 1
          %s1636 = smul.addr %s1635, 128
          %s1637 = scalar_lea.vmem [#allocation7], %s1636
          %1639 = dma.done %s1634, 2048
        $region48: #{tpu_custom_call.1} parent=43 // pred_fallthru
          _
      $region44: #{tpu_custom_call.1} parent=5 // pred_fallthru
        _
    $region6: #{tpu_custom_call.1} parent=1 // loop_footer
      %s19 = sadd.s32 1, %s15
    $region7: #{tpu_custom_call.1} parent=1 // loop_footer_branch
      %14 = sbr.rel target = $region3
    $region8: #{tpu_custom_call.1} parent=1 // loop_exit
      _
    %1640 = vsyncpa [#allocation3], 1
    %s1641 = scalar_lea.sflag [#allocation3], 1
    %1642 = vsyncpa %s1641, 1
    %1643 = vsyncpa [#allocation6], 1
    %1644 = vsyncpa [#allocation4], 1
    %s1645 = scalar_lea.sflag [#allocation4], 1
    %1646 = vsyncpa %s1645, 1

</llo_original>
